<compile_context>
chip_gen: v7x
topology: tpu7x:2x2x1
jax: 0.10.0
libtpu: 0.0.40
codegen_flags: <defaults>
</compile_context>

<pallas_src>
import math
import functools

import jax
import jax.numpy as jnp
from jax import lax
from jax.experimental import pallas as pl
from jax.experimental.pallas import tpu as pltpu


def _scores(q_ref, k_ref, w_ref, *, norm_factor, tanh_clipping):
    """norm * (q @ W) @ k^T followed by tanh clipping, in f32."""
    b_blk, n_query, n_dim = q_ref.shape
    # One flattened projection matmul for the whole batch block.
    q2d = q_ref[...].astype(jnp.float32).reshape(b_blk * n_query, n_dim)
    qw = lax.dot_general(
        q2d, w_ref[...].astype(jnp.float32),
        dimension_numbers=(((1,), (0,)), ((), ())),
        preferred_element_type=jnp.float32,
    ).reshape(b_blk, n_query, n_dim)
    # Batched contraction on the last dims of both operands (no K transpose).
    u = lax.dot_general(
        qw, k_ref[...].astype(jnp.float32),
        dimension_numbers=(((2,), (2,)), ((0,), (0,))),
        preferred_element_type=jnp.float32,
    )
    return tanh_clipping * jnp.tanh(norm_factor * u)


def _attn_kernel_nomask(q_ref, k_ref, w_ref, out_ref, *, norm_factor, tanh_clipping):
    u = _scores(q_ref, k_ref, w_ref,
                norm_factor=norm_factor, tanh_clipping=tanh_clipping)
    if 0.0 < tanh_clipping <= 30.0:
        # U is bounded in [-tanh_clipping, tanh_clipping]; exp() cannot
        # overflow, so skip the cross-lane max reduction.
        lse = jnp.log(jnp.sum(jnp.exp(u), axis=-1, keepdims=True))
    else:
        m = jnp.max(u, axis=-1, keepdims=True)
        lse = m + jnp.log(jnp.sum(jnp.exp(u - m), axis=-1, keepdims=True))
    out_ref[...] = (u - lse).astype(out_ref.dtype)


def _attn_kernel_masked(q_ref, k_ref, w_ref, mask_ref, out_ref,
                        *, norm_factor, tanh_clipping):
    u = _scores(q_ref, k_ref, w_ref,
                norm_factor=norm_factor, tanh_clipping=tanh_clipping)
    u = jnp.where(mask_ref[...] == 1, jnp.float32(-1e8), u)
    # Keep the stabilized form here so fully-masked rows match torch.log_softmax.
    m = jnp.max(u, axis=-1, keepdims=True)
    lse = m + jnp.log(jnp.sum(jnp.exp(u - m), axis=-1, keepdims=True))
    out_ref[...] = (u - lse).astype(out_ref.dtype)


def _pick_batch_block(n_batch, n_query, n_key, n_dim, with_mask,
                      budget_bytes=8 * 1024 * 1024):
    """Largest divisor of n_batch whose double-buffered tiles fit the budget."""
    per_item = 4 * (n_query * n_dim + n_key * n_dim + n_query * n_key)
    if with_mask:
        per_item += 4 * n_query * n_key
    b_blk = max(1, min(n_batch, budget_bytes // (2 * per_item)))
    while n_batch % b_blk:
        b_blk -= 1
    return b_blk


def single_head_attention(q, k, w_query, w_key, mask=None, *, tanh_clipping=10.0):
    """q: (B, n_query, D), k: (B, n_key, D), w_*: (D, D), mask: (B, n_query, n_key) or None."""
    n_batch, n_query, n_dim = q.shape
    _, n_key, _ = k.shape
    norm_factor = 1.0 / math.sqrt(n_dim)

    # Fuse the projections outside the kernel:
    #   Q K^T = (q Wq)(k Wk)^T = q (Wq Wk^T) k^T
    w_fused = jnp.dot(w_query.astype(jnp.float32), w_key.astype(jnp.float32).T,
                      preferred_element_type=jnp.float32)

    with_mask = mask is not None
    b_blk = _pick_batch_block(n_batch, n_query, n_key, n_dim, with_mask)
    grid = (n_batch // b_blk,)

    # Advisory cost estimate for the XLA scheduler.
    flops = 2 * n_batch * n_query * n_dim * n_dim + 2 * n_batch * n_query * n_key * n_dim
    transcendentals = 2 * n_batch * n_query * n_key + n_batch * n_query
    bytes_accessed = 4 * (n_batch * n_query * n_dim + n_batch * n_key * n_dim
                          + n_dim * n_dim + n_batch * n_query * n_key)
    if with_mask:
        bytes_accessed += 4 * n_batch * n_query * n_key
    cost = pl.CostEstimate(flops=flops, transcendentals=transcendentals,
                           bytes_accessed=bytes_accessed)

    q_spec = pl.BlockSpec((b_blk, n_query, n_dim), lambda b: (b, 0, 0))
    k_spec = pl.BlockSpec((b_blk, n_key, n_dim), lambda b: (b, 0, 0))
    w_spec = pl.BlockSpec((n_dim, n_dim), lambda b: (0, 0))  # resident, fetched once
    out_spec = pl.BlockSpec((b_blk, n_query, n_key), lambda b: (b, 0, 0))

    compiler_params = pltpu.CompilerParams(
        dimension_semantics=("parallel",),
        vmem_limit_bytes=32 * 1024 * 1024,
    )

    if with_mask:
        kernel = functools.partial(_attn_kernel_masked,
                                   norm_factor=norm_factor,
                                   tanh_clipping=tanh_clipping)
        mask_spec = pl.BlockSpec((b_blk, n_query, n_key), lambda b: (b, 0, 0))
        return pl.pallas_call(
            kernel,
            out_shape=jax.ShapeDtypeStruct((n_batch, n_query, n_key), jnp.float32),
            grid_spec=pltpu.PrefetchScalarGridSpec(
                num_scalar_prefetch=0,
                grid=grid,
                in_specs=[q_spec, k_spec, w_spec, mask_spec],
                out_specs=out_spec,
            ),
            compiler_params=compiler_params,
            cost_estimate=cost,
        )(q, k, w_fused, mask.astype(jnp.int32))
    else:
        kernel = functools.partial(_attn_kernel_nomask,
                                   norm_factor=norm_factor,
                                   tanh_clipping=tanh_clipping)
        return pl.pallas_call(
            kernel,
            out_shape=jax.ShapeDtypeStruct((n_batch, n_query, n_key), jnp.float32),
            grid_spec=pltpu.PrefetchScalarGridSpec(
                num_scalar_prefetch=0,
                grid=grid,
                in_specs=[q_spec, k_spec, w_spec],
                out_specs=out_spec,
            ),
            compiler_params=compiler_params,
            cost_estimate=cost,
        )(q, k, w_fused)


def _reference(q, k, w_query, w_key, mask=None, tanh_clipping=10.0):
    n_dim = q.shape[-1]
    norm = 1.0 / math.sqrt(n_dim)
    Q = jnp.einsum("bqd,de->bqe", q, w_query)
    K = jnp.einsum("bkd,de->bke", k, w_key)
    U = norm * jnp.einsum("bqe,bke->bqk", Q, K)
    U = tanh_clipping * jnp.tanh(U)
    if mask is not None:
        U = jnp.where(mask == 1, -1e8, U)
    return jax.nn.log_softmax(U, axis=-1)


if __name__ == "__main__":
    key = jax.random.PRNGKey(0)
    embedding_dim = 32
    batch, n_query, n_key = 2, 8, 8

    k_q, k_k, k_wq, k_wk, k_m = jax.random.split(key, 5)
    stdv = 1.0 / math.sqrt(embedding_dim)
    w_query = jax.random.uniform(k_wq, (embedding_dim, embedding_dim),
                                 minval=-stdv, maxval=stdv, dtype=jnp.float32)
    w_key = jax.random.uniform(k_wk, (embedding_dim, embedding_dim),
                               minval=-stdv, maxval=stdv, dtype=jnp.float32)
    q = jax.random.normal(k_q, (batch, n_query, embedding_dim), dtype=jnp.float32)
    kk = jax.random.normal(k_k, (batch, n_key, embedding_dim), dtype=jnp.float32)

    # --- no-mask path (specialized kernel: no dummy mask DMA) ---
    out = jax.block_until_ready(single_head_attention(q, kk, w_query, w_key, mask=None))
    ref = _reference(q, kk, w_query, w_key, mask=None)
    assert out.shape == (batch, n_query, n_key)
    assert jnp.allclose(out, ref, atol=1e-4, rtol=1e-4), "no-mask mismatch vs reference"

    # --- masked path ---
    mask = (jax.random.uniform(k_m, (batch, n_query, n_key)) < 0.3).astype(jnp.int32)
    out_m = jax.block_until_ready(single_head_attention(q, kk, w_query, w_key, mask=mask))
    ref_m = _reference(q, kk, w_query, w_key, mask=mask)
    assert jnp.allclose(out_m, ref_m, atol=1e-4, rtol=1e-4), "masked mismatch vs reference"

    print("KERNEL_OK")
</pallas_src>

<mosaic_0001>
module attributes {stable_mosaic.version = 11 : i64} {
  func.func @_attn_kernel_nomask(%arg0: i32, %arg1: memref<2x8x32xf32, #tpu.memory_space<vmem>>, %arg2: memref<2x8x32xf32, #tpu.memory_space<vmem>>, %arg3: memref<32x32xf32, #tpu.memory_space<vmem>>, %arg4: memref<2x8x8xf32, #tpu.memory_space<vmem>>) attributes {dimension_semantics = [#tpu.dimension_semantics<parallel>], iteration_bounds = array<i64: 1>, scalar_prefetch = 0 : i64, scratch_operands = 0 : i64, tpu.core_type = #tpu.core_type<tc>, window_params = [{transform_indices = @transform_0, window_bounds = array<i64: 2, 8, 32>}, {transform_indices = @transform_1, window_bounds = array<i64: 2, 8, 32>}, {pipeline_mode = #tpu.pipeline_mode<synchronous>, transform_indices = @transform_2, window_bounds = array<i64: 32, 32>}, {transform_indices = @transform_3, window_bounds = array<i64: 2, 8, 8>}]} {
    %c0 = arith.constant 0 : index
    %c0_0 = arith.constant 0 : index
    %c0_1 = arith.constant 0 : index
    %0 = vector.load %arg1[%c0, %c0_0, %c0_1] : memref<2x8x32xf32, #tpu.memory_space<vmem>>, vector<2x8x32xf32>
    %1 = vector.shape_cast %0 : vector<2x8x32xf32> to vector<16x32xf32>
    %c0_2 = arith.constant 0 : index
    %c0_3 = arith.constant 0 : index
    %2 = vector.load %arg3[%c0_2, %c0_3] : memref<32x32xf32, #tpu.memory_space<vmem>>, vector<32x32xf32>
    %cst = arith.constant dense<0.000000e+00> : vector<16x32xf32>
    %3 = tpu.matmul %1, %2, %cst {dimension_numbers = #tpu.dot_dimension_numbers<[1], [0], [0], [1], [0, 0, 1, 1], [], []>} : vector<16x32xf32>, vector<32x32xf32>, vector<16x32xf32> -> vector<16x32xf32>
    %4 = vector.shape_cast %3 : vector<16x32xf32> to vector<2x8x32xf32>
    %c0_4 = arith.constant 0 : index
    %c0_5 = arith.constant 0 : index
    %c0_6 = arith.constant 0 : index
    %5 = vector.load %arg2[%c0_4, %c0_5, %c0_6] : memref<2x8x32xf32, #tpu.memory_space<vmem>>, vector<2x8x32xf32>
    %cst_7 = arith.constant dense<0.000000e+00> : vector<2x8x8xf32>
    %6 = tpu.matmul %4, %5, %cst_7 {dimension_numbers = #tpu.dot_dimension_numbers<[2], [2], [1], [1], [0, 0, 0, 1, 1, 1], [0], [0]>} : vector<2x8x32xf32>, vector<2x8x32xf32>, vector<2x8x8xf32> -> vector<2x8x8xf32>
    %cst_8 = arith.constant 0.176776692 : f32
    %7 = vector.broadcast %cst_8 : f32 to vector<2x8x8xf32>
    %8 = arith.mulf %7, %6 : vector<2x8x8xf32>
    %9 = math.tanh %8 : vector<2x8x8xf32>
    %cst_9 = arith.constant 1.000000e+01 : f32
    %10 = vector.broadcast %cst_9 : f32 to vector<2x8x8xf32>
    %11 = arith.mulf %10, %9 : vector<2x8x8xf32>
    %12 = math.exp %11 : vector<2x8x8xf32>
    %cst_10 = arith.constant dense<0.000000e+00> : vector<2x8xf32>
    %13 = vector.multi_reduction <add>, %12, %cst_10 [2] : vector<2x8x8xf32> to vector<2x8xf32>
    %14 = vector.shape_cast %13 : vector<2x8xf32> to vector<2x8x1xf32>
    %15 = math.log %14 : vector<2x8x1xf32>
    %16 = vector.broadcast %15 : vector<2x8x1xf32> to vector<2x8x8xf32>
    %17 = arith.subf %11, %16 : vector<2x8x8xf32>
    %c0_11 = arith.constant 0 : index
    %c0_12 = arith.constant 0 : index
    %c0_13 = arith.constant 0 : index
    %18 = vector.load %arg4[%c0_11, %c0_12, %c0_13] : memref<2x8x8xf32, #tpu.memory_space<vmem>>, vector<2x8x8xf32>
    tpu.vector_store %arg4[%c0_11, %c0_12, %c0_13], %17 {strides = array<i32>} : memref<2x8x8xf32, #tpu.memory_space<vmem>>, vector<2x8x8xf32>,
    return
  }
  func.func @transform_0(%arg0: i32) -> (i32, i32, i32) {
    %c0_i32 = arith.constant 0 : i32
    %c0_i32_0 = arith.constant 0 : i32
    %c0_i32_1 = arith.constant 0 : i32
    return %arg0, %c0_i32, %c0_i32_0 : i32, i32, i32
  }
  func.func @transform_1(%arg0: i32) -> (i32, i32, i32) {
    %c0_i32 = arith.constant 0 : i32
    %c0_i32_0 = arith.constant 0 : i32
    %c0_i32_1 = arith.constant 0 : i32
    return %arg0, %c0_i32, %c0_i32_0 : i32, i32, i32
  }
  func.func @transform_2(%arg0: i32) -> (i32, i32) {
    %c0_i32 = arith.constant 0 : i32
    %c0_i32_0 = arith.constant 0 : i32
    %c0_i32_1 = arith.constant 0 : i32
    return %c0_i32, %c0_i32_0 : i32, i32
  }
  func.func @transform_3(%arg0: i32) -> (i32, i32, i32) {
    %c0_i32 = arith.constant 0 : i32
    %c0_i32_0 = arith.constant 0 : i32
    %c0_i32_1 = arith.constant 0 : i32
    return %arg0, %c0_i32, %c0_i32_0 : i32, i32, i32
  }
}

</mosaic_0001>

<llo_original>
// kernel: tpu_custom_call.1
$region0: #{tpu_custom_call.1}
  #allocation0 [shape = 'u32[]', space=smem, size = 0x4, offset = 0x4, fixed_abs, tag = 'smem constant byte address 0x4 - core index']
  #allocation1 [shape = 'u32[144,128]{1,0:T(1,128)}', space=vmem, size = 0x12000, scoped, tag = 'internal scratch']
  %s0 = inlined_call_operand.hbm [shape: f32[2,8,32], index: 0, kind: input, shape index: {}]
  %s1 = inlined_call_operand.hbm [shape: f32[2,8,32], index: 1, kind: input, shape index: {}]
  %s2 = inlined_call_operand.hbm [shape: f32[32,32], index: 2, kind: input, shape index: {}]
  %s3 = inlined_call_operand.hbm [shape: f32[2,8,8], index: 3, kind: output, shape index: {}]
  %s4 = sld [smem:[#allocation0]]
  $region34: #{tpu_custom_call.1} parent=0
    _
  %s6 = ssub.s32 1, %s4
  %s7 = scalar_select 0, %s6, %s4
  $region1: #{tpu_custom_call.1} parent=0
    #allocation2 [shape = 'u8[8192]{0}', space=vmem, size = 0x2000, scoped, tag = 'input window, operand 0, single buffered']
    #allocation3 [shape = 's32[1]{0}', space=sflag, size = 0x4, scoped, tag = 'scoped memory for tpu_custom_call.1']
    #allocation4 [shape = 's32[1]{0}', space=sflag, size = 0x4, scoped, tag = 'scoped memory for tpu_custom_call.1']
    #allocation5 [shape = 'u8[8192]{0}', space=vmem, size = 0x2000, scoped, tag = 'input window, operand 1, single buffered']
    #allocation6 [shape = 's32[1]{0}', space=sflag, size = 0x4, scoped, tag = 'scoped memory for tpu_custom_call.1']
    #allocation7 [shape = 'u8[16384]{0}', space=vmem, size = 0x4000, scoped, tag = 'input window, operand 2, single buffered']
    #allocation8 [shape = 'u8[8192]{0}', space=vmem, size = 0x2000, scoped, tag = 'output window, operand 0, single buffered']
    %8 = vsyncpa [#allocation3], 0
    %9 = vsyncpa [#allocation6], 0
    %10 = vsyncpa [#allocation4], 0
    // Predicated region
    $region2: #{tpu_custom_call.1} parent=1 // pred_check
      _
    $region3: #{tpu_custom_call.1} parent=1 // pred_check_branch
      %12 = sbr.rel (0) target = $region5
    $region4: #{tpu_custom_call.1} parent=1 // pred_region
      %s14 = ssub.s32 256, 256
      %15 = vsyncadd [#allocation3], %s14
      %s16 = sshll.u32 [#allocation2], 4
      %s17 = int_to_ptr.vmem [resolvable:$true] %s16
      %22 = dma.hbm_to_vmem [thread:$0]  %s0, 256, %s17, [#allocation3], 128, 128, 8
    $region5: #{tpu_custom_call.1} parent=1 // pred_fallthru
      _
    // Predicated region
    $region6: #{tpu_custom_call.1} parent=1 // pred_check
      _
    $region7: #{tpu_custom_call.1} parent=1 // pred_check_branch
      %24 = sbr.rel (0) target = $region9
    $region8: #{tpu_custom_call.1} parent=1 // pred_region
      %s26 = ssub.s32 256, 256
      %27 = vsyncadd [#allocation6], %s26
      %s28 = sshll.u32 [#allocation5], 4
      %s29 = int_to_ptr.vmem [resolvable:$true] %s28
      %34 = dma.hbm_to_vmem [thread:$0]  %s1, 256, %s29, [#allocation6], 128, 128, 8
    $region9: #{tpu_custom_call.1} parent=1 // pred_fallthru
      _
    // Predicated region
    $region10: #{tpu_custom_call.1} parent=1 // pred_check
      _
    $region11: #{tpu_custom_call.1} parent=1 // pred_check_branch
      %36 = sbr.rel (0) target = $region13
    $region12: #{tpu_custom_call.1} parent=1 // pred_region
      %s38 = ssub.s32 512, 512
      %39 = vsyncadd [#allocation6], %s38
      %s40 = sshll.u32 [#allocation7], 4
      %s41 = int_to_ptr.vmem [resolvable:$true] %s40
      %46 = dma.hbm_to_vmem [thread:$0]  %s2, 512, %s41, [#allocation6], 128, 128, 8
    $region13: #{tpu_custom_call.1} parent=1 // pred_fallthru
      _
    // Predicated region
    $region14: #{tpu_custom_call.1} parent=1 // pred_check
      _
    $region15: #{tpu_custom_call.1} parent=1 // pred_check_branch
      %48 = sbr.rel (0) target = $region17
    $region16: #{tpu_custom_call.1} parent=1 // pred_region
      %49 = dma.done [#allocation3], 256
    $region17: #{tpu_custom_call.1} parent=1 // pred_fallthru
      _
    // Predicated region
    $region18: #{tpu_custom_call.1} parent=1 // pred_check
      _
    $region19: #{tpu_custom_call.1} parent=1 // pred_check_branch
      %51 = sbr.rel (0) target = $region21
    $region20: #{tpu_custom_call.1} parent=1 // pred_region
      %52 = dma.done [#allocation6], 256
    $region21: #{tpu_custom_call.1} parent=1 // pred_fallthru
      _
    // Predicated region
    $region22: #{tpu_custom_call.1} parent=1 // pred_check
      _
    $region23: #{tpu_custom_call.1} parent=1 // pred_check_branch
      %54 = sbr.rel (0) target = $region25
    $region24: #{tpu_custom_call.1} parent=1 // pred_region
      %55 = dma.done [#allocation6], 512
    $region25: #{tpu_custom_call.1} parent=1 // pred_fallthru
      _
    %v56 = vld [vmem:[#allocation2] sm:$0xff]
    %v57 = vld [vmem:[#allocation2 + $0x8] sm:$0xff]
    %v58 = vld [vmem:[#allocation7] sm:$0xff]
    %v59 = vld [vmem:[#allocation7 + $0x8] sm:$0xff]
    %v60 = vld [vmem:[#allocation7 + $0x10] sm:$0xff]
    %v61 = vld [vmem:[#allocation7 + $0x18] sm:$0xff]
    %vm62 = vcmask 261120
    %v64 = vsel %vm62, %v56, 0
    %v67 = vsel %vm62, %v57, 0
    %69 = vmatprep.subr.mxu0 0.0
    %70 = vmatpush1.msra.mxu0 %v58
    %71 = vmatprep.subr.mxu0 0.0
    %72 = vmatpush1.msra.mxu0 %v59
    %73 = vmatprep.subr.mxu0 0.0
    %74 = vmatpush1.msra.mxu0 %v60
    %75 = vmatprep.subr.mxu0 0.0
    %76 = vmatpush1.msra.mxu0 %v61
    %77 = vmatprep.subr.mxu0 0.0
    %78 = vmatpush1.msra.mxu0 0.0
    %79 = vmatprep.subr.mxu0 0.0
    %80 = vmatpush1.msra.mxu0 0.0
    %81 = vmatprep.subr.mxu0 0.0
    %82 = vmatpush1.msra.mxu0 0.0
    %83 = vmatprep.subr.mxu0 0.0
    %84 = vmatpush1.msra.mxu0 0.0
    %85 = vmatprep.subr.mxu0 0.0
    %86 = vmatpush1.msra.mxu0 0.0
    %87 = vmatprep.subr.mxu0 0.0
    %88 = vmatpush1.msra.mxu0 0.0
    %89 = vmatprep.subr.mxu0 0.0
    %90 = vmatpush1.msra.mxu0 0.0
    %91 = vmatprep.subr.mxu0 0.0
    %92 = vmatpush1.msra.mxu0 0.0
    %93 = vmatprep.subr.mxu0 0.0
    %94 = vmatpush1.msra.mxu0 0.0
    %95 = vmatprep.subr.mxu0 0.0
    %96 = vmatpush1.msra.mxu0 0.0
    %97 = vmatprep.subr.mxu0 0.0
    %98 = vmatpush1.msra.mxu0 0.0
    %99 = vmatprep.subr.mxu0 0.0
    %100 = vmatpush1.msra.mxu0 0.0
    %101 = vmatprep.subr.mxu0 0.0
    %102 = vmatpush1.msra.mxu0 0.0
    %103 = vmatprep.subr.mxu0 0.0
    %104 = vmatpush1.msra.mxu0 0.0
    %105 = vmatprep.subr.mxu0 0.0
    %106 = vmatpush1.msra.mxu0 0.0
    %107 = vmatprep.subr.mxu0 0.0
    %108 = vmatpush1.msra.mxu0 0.0
    %109 = vmatprep.subr.mxu0 0.0
    %110 = vmatpush1.msra.mxu0 0.0
    %111 = vmatprep.subr.mxu0 0.0
    %112 = vmatpush1.msra.mxu0 0.0
    %113 = vmatprep.subr.mxu0 0.0
    %114 = vmatpush1.msra.mxu0 0.0
    %115 = vmatprep.subr.mxu0 0.0
    %116 = vmatpush1.msra.mxu0 0.0
    %117 = vmatprep.subr.mxu0 0.0
    %118 = vmatpush1.msra.mxu0 0.0
    %119 = vmatprep.subr.mxu0 0.0
    %120 = vmatpush1.msra.mxu0 0.0
    %121 = vmatprep.subr.mxu0 0.0
    %122 = vmatpush1.msra.mxu0 0.0
    %123 = vmatprep.subr.mxu0 0.0
    %124 = vmatpush1.msra.mxu0 0.0
    %125 = vmatprep.subr.mxu0 0.0
    %126 = vmatpush1.msra.mxu0 0.0
    %127 = vmatprep.subr.mxu0 0.0
    %128 = vmatpush1.msra.mxu0 0.0
    %129 = vmatprep.subr.mxu0 0.0
    %130 = vmatpush1.msra.mxu0 0.0
    %131 = vmatprep.subr.mxu0 0.0
    %132 = vmatpush1.msra.mxu0 0.0
    %133 = vmatprep.mubr.f32.mxu0 0.0
    %134 = vmatmul.mubr.f32.gmra.mrb[0].mxu0 %v64
    %v135 = vpop.f32.mrb[0].mxu0
    %v136 = vadd.f32 0.0, %v135
    %v137 = vpop.f32.mrb[0].mxu0
    %138 = vmatprep.mubr.f32.mxu0 0.0
    %139 = vmatmul.mubr.f32.gmra.mrb[0].mxu0 %v67
    %v140 = vpop.f32.mrb[0].mxu0
    %v141 = vadd.f32 0.0, %v140
    %v142 = vpop.f32.mrb[0].mxu0
    %143 = vdwg.mxu0
    %v144 = vld [vmem:[#allocation5] sm:$0xff]
    %v145 = vld [vmem:[#allocation5 + $0x8] sm:$0xff]
    %v147 = vsel %vm62, %v136, 0
    %v150 = vsel %vm62, %v144, 0
    %152 = vmatprep.subr.mxu0 0.0
    %153 = vmatpush1.xpose.msra.mxu0 %v150
    %154 = vmatprep.subr.mxu0 0.0
    %155 = vmatpush1.xpose.msra.mxu0 0.0
    %156 = vmatprep.subr.mxu0 0.0
    %157 = vmatpush1.xpose.msra.mxu0 0.0
    %158 = vmatprep.subr.mxu0 0.0
    %159 = vmatpush1.xpose.msra.mxu0 0.0
    %160 = vmatprep.subr.mxu0 0.0
    %161 = vmatpush1.xpose.msra.mxu0 0.0
    %162 = vmatprep.subr.mxu0 0.0
    %163 = vmatpush1.xpose.msra.mxu0 0.0
    %164 = vmatprep.subr.mxu0 0.0
    %165 = vmatpush1.xpose.msra.mxu0 0.0
    %166 = vmatprep.subr.mxu0 0.0
    %167 = vmatpush1.xpose.msra.mxu0 0.0
    %168 = vmatprep.subr.mxu0 0.0
    %169 = vmatpush1.xpose.msra.mxu0 0.0
    %170 = vmatprep.subr.mxu0 0.0
    %171 = vmatpush1.xpose.msra.mxu0 0.0
    %172 = vmatprep.subr.mxu0 0.0
    %173 = vmatpush1.xpose.msra.mxu0 0.0
    %174 = vmatprep.subr.mxu0 0.0
    %175 = vmatpush1.xpose.msra.mxu0 0.0
    %176 = vmatprep.subr.mxu0 0.0
    %177 = vmatpush1.xpose.msra.mxu0 0.0
    %178 = vmatprep.subr.mxu0 0.0
    %179 = vmatpush1.xpose.msra.mxu0 0.0
    %180 = vmatprep.subr.mxu0 0.0
    %181 = vmatpush1.xpose.msra.mxu0 0.0
    %182 = vmatprep.subr.mxu0 0.0
    %183 = vmatpush1.xpose.msra.mxu0 0.0
    %184 = vmatprep.subr.mxu0 0.0
    %185 = vmatpush1.xpose.msra.mxu0 0.0
    %186 = vmatprep.subr.mxu0 0.0
    %187 = vmatpush1.xpose.msra.mxu0 0.0
    %188 = vmatprep.subr.mxu0 0.0
    %189 = vmatpush1.xpose.msra.mxu0 0.0
    %190 = vmatprep.subr.mxu0 0.0
    %191 = vmatpush1.xpose.msra.mxu0 0.0
    %192 = vmatprep.subr.mxu0 0.0
    %193 = vmatpush1.xpose.msra.mxu0 0.0
    %194 = vmatprep.subr.mxu0 0.0
    %195 = vmatpush1.xpose.msra.mxu0 0.0
    %196 = vmatprep.subr.mxu0 0.0
    %197 = vmatpush1.xpose.msra.mxu0 0.0
    %198 = vmatprep.subr.mxu0 0.0
    %199 = vmatpush1.xpose.msra.mxu0 0.0
    %200 = vmatprep.subr.mxu0 0.0
    %201 = vmatpush1.xpose.msra.mxu0 0.0
    %202 = vmatprep.subr.mxu0 0.0
    %203 = vmatpush1.xpose.msra.mxu0 0.0
    %204 = vmatprep.subr.mxu0 0.0
    %205 = vmatpush1.xpose.msra.mxu0 0.0
    %206 = vmatprep.subr.mxu0 0.0
    %207 = vmatpush1.xpose.msra.mxu0 0.0
    %208 = vmatprep.subr.mxu0 0.0
    %209 = vmatpush1.xpose.msra.mxu0 0.0
    %210 = vmatprep.subr.mxu0 0.0
    %211 = vmatpush1.xpose.msra.mxu0 0.0
    %212 = vmatprep.subr.mxu0 0.0
    %213 = vmatpush1.xpose.msra.mxu0 0.0
    %214 = vmatprep.subr.mxu0 0.0
    %215 = vmatpush1.xpose.msra.mxu0 0.0
    %216 = vmatprep.mubr.f32.mxu0 0.0
    %217 = vmatmul.mubr.f32.gmra.mrb[0].mxu0 %v147
    %v218 = vpop.f32.mrb[0].mxu0
    %v219 = vadd.f32 0.0, %v218
    %v220 = vpop.f32.mrb[0].mxu0
    %221 = vdwg.mxu0
    %v223 = vsel %vm62, %v141, 0
    %v226 = vsel %vm62, %v145, 0
    %228 = vmatprep.subr.mxu0 0.0
    %229 = vmatpush1.xpose.msra.mxu0 %v226
    %230 = vmatprep.subr.mxu0 0.0
    %231 = vmatpush1.xpose.msra.mxu0 0.0
    %232 = vmatprep.subr.mxu0 0.0
    %233 = vmatpush1.xpose.msra.mxu0 0.0
    %234 = vmatprep.subr.mxu0 0.0
    %235 = vmatpush1.xpose.msra.mxu0 0.0
    %236 = vmatprep.subr.mxu0 0.0
    %237 = vmatpush1.xpose.msra.mxu0 0.0
    %238 = vmatprep.subr.mxu0 0.0
    %239 = vmatpush1.xpose.msra.mxu0 0.0
    %240 = vmatprep.subr.mxu0 0.0
    %241 = vmatpush1.xpose.msra.mxu0 0.0
    %242 = vmatprep.subr.mxu0 0.0
    %243 = vmatpush1.xpose.msra.mxu0 0.0
    %244 = vmatprep.subr.mxu0 0.0
    %245 = vmatpush1.xpose.msra.mxu0 0.0
    %246 = vmatprep.subr.mxu0 0.0
    %247 = vmatpush1.xpose.msra.mxu0 0.0
    %248 = vmatprep.subr.mxu0 0.0
    %249 = vmatpush1.xpose.msra.mxu0 0.0
    %250 = vmatprep.subr.mxu0 0.0
    %251 = vmatpush1.xpose.msra.mxu0 0.0
    %252 = vmatprep.subr.mxu0 0.0
    %253 = vmatpush1.xpose.msra.mxu0 0.0
    %254 = vmatprep.subr.mxu0 0.0
    %255 = vmatpush1.xpose.msra.mxu0 0.0
    %256 = vmatprep.subr.mxu0 0.0
    %257 = vmatpush1.xpose.msra.mxu0 0.0
    %258 = vmatprep.subr.mxu0 0.0
    %259 = vmatpush1.xpose.msra.mxu0 0.0
    %260 = vmatprep.subr.mxu0 0.0
    %261 = vmatpush1.xpose.msra.mxu0 0.0
    %262 = vmatprep.subr.mxu0 0.0
    %263 = vmatpush1.xpose.msra.mxu0 0.0
    %264 = vmatprep.subr.mxu0 0.0
    %265 = vmatpush1.xpose.msra.mxu0 0.0
    %266 = vmatprep.subr.mxu0 0.0
    %267 = vmatpush1.xpose.msra.mxu0 0.0
    %268 = vmatprep.subr.mxu0 0.0
    %269 = vmatpush1.xpose.msra.mxu0 0.0
    %270 = vmatprep.subr.mxu0 0.0
    %271 = vmatpush1.xpose.msra.mxu0 0.0
    %272 = vmatprep.subr.mxu0 0.0
    %273 = vmatpush1.xpose.msra.mxu0 0.0
    %274 = vmatprep.subr.mxu0 0.0
    %275 = vmatpush1.xpose.msra.mxu0 0.0
    %276 = vmatprep.subr.mxu0 0.0
    %277 = vmatpush1.xpose.msra.mxu0 0.0
    %278 = vmatprep.subr.mxu0 0.0
    %279 = vmatpush1.xpose.msra.mxu0 0.0
    %280 = vmatprep.subr.mxu0 0.0
    %281 = vmatpush1.xpose.msra.mxu0 0.0
    %282 = vmatprep.subr.mxu0 0.0
    %283 = vmatpush1.xpose.msra.mxu0 0.0
    %284 = vmatprep.subr.mxu0 0.0
    %285 = vmatpush1.xpose.msra.mxu0 0.0
    %286 = vmatprep.subr.mxu0 0.0
    %287 = vmatpush1.xpose.msra.mxu0 0.0
    %288 = vmatprep.subr.mxu0 0.0
    %289 = vmatpush1.xpose.msra.mxu0 0.0
    %290 = vmatprep.subr.mxu0 0.0
    %291 = vmatpush1.xpose.msra.mxu0 0.0
    %292 = vmatprep.mubr.f32.mxu0 0.0
    %293 = vmatmul.mubr.f32.gmra.mrb[0].mxu0 %v223
    %v294 = vpop.f32.mrb[0].mxu0
    %v295 = vadd.f32 0.0, %v294
    %v296 = vpop.f32.mrb[0].mxu0
    %297 = vdwg.mxu0
    %v298 = vmul.f32 %v219, 0.17677669
    %v299 = vmul.f32 %v295, 0.17677669
    %v300 = vtanh.pop %v298
    %v301 = vtanh.pop %v299
    %v302 = vmul.f32 %v300, 10.0
    %v303 = vmul.f32 %v301, 10.0
    %v304 = vmul.f32 %v302, 1.442695
    %v305 = vpow.pop %v304
    %v306 = vmul.f32 %v303, 1.442695
    %v307 = vpow.pop %v306
    %vm308 = vcmask 64512
    %v309 = vsel %vm308, %v305, 0.0
    %310 = vadd.xlane.f32.xlu0 %v309
    %v311 = vpop.xlane.xlu0 %310
    %v312 = vsel %vm308, %v307, 0.0
    %313 = vadd.xlane.f32.xlu0 %v312
    %v314 = vpop.xlane.xlu0 %313
    %v315 = vlog2.pop %v311
    %v316 = vmul.f32 %v315, 0.6931472
    %v317 = vlog2.pop %v314
    %v318 = vmul.f32 %v317, 0.6931472
    %v319 = vsub.f32 %v302, %v316
    %v320 = vsub.f32 %v303, %v318
    %321 = vst.msk [vmem:[#allocation8] sm:$0xff] %vm308, %v319
    %322 = vst.msk [vmem:[#allocation8 + $0x8] sm:$0xff] %vm308, %v320
    // Predicated region
    $region26: #{tpu_custom_call.1} parent=1 // pred_check
      _
    $region27: #{tpu_custom_call.1} parent=1 // pred_check_branch
      %324 = sbr.rel (0) target = $region29
    $region28: #{tpu_custom_call.1} parent=1 // pred_region
      %s326 = ssub.s32 256, 256
      %327 = vsyncadd [#allocation4], %s326
      %s328 = sshll.u32 [#allocation8], 4
      %s329 = int_to_ptr.vmem [resolvable:$true] %s328
      %334 = dma.vmem_to_hbm [thread:$0]  %s329, 256, %s3, [#allocation4], 128, 128, 8
    $region29: #{tpu_custom_call.1} parent=1 // pred_fallthru
      _
    // Predicated region
    $region30: #{tpu_custom_call.1} parent=1 // pred_check
      _
    $region31: #{tpu_custom_call.1} parent=1 // pred_check_branch
      %336 = sbr.rel (0) target = $region33
    $region32: #{tpu_custom_call.1} parent=1 // pred_region
      %337 = dma.done [#allocation4], 256
    $region33: #{tpu_custom_call.1} parent=1 // pred_fallthru
      _
    %338 = vsyncpa [#allocation3], 1
    %339 = vsyncpa [#allocation6], 1
    %340 = vsyncpa [#allocation4], 1

</llo_original>
